<compile_context>
chip_gen: v5e
topology: v5e:2x2
jax: 0.10.0
libtpu: 0.0.40
codegen_flags: <defaults>
</compile_context>

<pallas_src>
import math
from functools import partial

import jax
import jax.numpy as jnp
import numpy as np
from jax.experimental import pallas as pl
from jax.experimental.pallas import tpu as pltpu


def qmt_kernel(qkv_ref, wqkv_ref, wocf_ref, consts_ref,
               attn_ref, metrics_ref,
               *, num_heads, hidden_dim, cohomology_dim, motive_rank, n_steps):
    """One grid step processes `batch_block` batch elements.

    Fused-QKV projection (bias folded into the weight) -> attention with exact
    f32 softmax -> fused (output o cohomology|field) projection -> in-kernel
    metric reductions packed into one (1,128) f32 row.
    """
    BB, S, _ = qkv_ref.shape
    D = hidden_dim
    H = num_heads
    hd = D // H
    C = cohomology_dim
    R = motive_rank
    CR = C * R
    M = BB * S
    MH = BB * H

    # ---- fused QKV projection: (M, 3D+1) @ [block_diag(Wq,Wk,Wv); b_qkv] ----
    x = qkv_ref[...].reshape(M, 3 * D + 1)                    # bf16, ones column last
    y = jnp.dot(x, wqkv_ref[...], preferred_element_type=jnp.float32)   # (M, 3D) f32

    Q = y[:, 0 * D:1 * D].reshape(BB, S, D)
    K = y[:, 1 * D:2 * D].reshape(BB, S, D)
    V = y[:, 2 * D:3 * D].reshape(BB, S, D)

    # ---- attention: heads folded into the matmul batch dimension ----
    if H == 1:
        Qh, Kh, Vh = Q, K, V                                   # (BB, S, D), hd == D
    else:
        def split(t):                                          # (BB,S,D) -> (BB*H,S,hd)
            return t.reshape(BB, S, H, hd).transpose(0, 2, 1, 3).reshape(MH, S, hd)
        Qh, Kh, Vh = split(Q), split(K), split(V)

    scale = 1.0 / math.sqrt(hd)
    s = jnp.einsum('bqd,bkd->bqk', Qh.astype(jnp.bfloat16), Kh.astype(jnp.bfloat16),
                   preferred_element_type=jnp.float32) * scale          # (MH,S,S) f32
    m = jnp.max(s, axis=-1, keepdims=True)
    e = jnp.exp(s - m)
    denom = jnp.sum(e, axis=-1, keepdims=True)
    w = e / denom                                              # exact normalization
    attn_ref[...] = w.reshape(BB, H, S, S)

    ctx = jnp.einsum('bqk,bkd->bqd', w.astype(jnp.bfloat16), Vh.astype(jnp.bfloat16),
                     preferred_element_type=jnp.float32)       # (MH, S, hd)
    if H == 1:
        ctx2 = ctx.reshape(M, D)
    else:
        ctx2 = ctx.reshape(BB, H, S, hd).transpose(0, 2, 1, 3).reshape(M, D)

    # ---- fused (output o cohomology|field) projection: ctx @ (Wo @ [Wc|Wf]) ----
    consts = consts_ref[...]                                   # (1, consts_w) f32
    b_ocf = consts[:, 0:CR + D]                                # (1, CR+D)
    cf = jnp.dot(ctx2.astype(jnp.bfloat16), wocf_ref[...],
                 preferred_element_type=jnp.float32) + b_ocf   # (M, CR+D) f32

    cohom = cf[:, :CR]                                         # (M, CR)
    field = cf[:, CR:]                                         # (M, D)

    # ---- in-kernel metric reductions (all f32) ----
    # cohomology_class + adelic_norm via static lane slices (avoids lane-splitting
    # reshape); R is small.
    inv_mr = 1.0 / (M * R)
    cls_sum = jnp.zeros((1, C), jnp.float32)
    adelic_sum = jnp.zeros((1, 1), jnp.float32)
    for r in range(R):
        blk = cohom[:, r * C:(r + 1) * C]                      # (M, C)
        cls_sum = cls_sum + jnp.sum(blk, axis=0, keepdims=True)
        nrm = jnp.sqrt(jnp.sum(blk * blk, axis=-1, keepdims=True))        # (M, 1)
        adelic_sum = adelic_sum + jnp.sum(nrm, axis=0, keepdims=True)
    cohom_class = cls_sum * inv_mr                             # (1, C)
    adelic = adelic_sum * inv_mr                               # (1, 1)

    # l_function_value = mean row 2-norm of field
    fnrm = jnp.sqrt(jnp.sum(field * field, axis=-1, keepdims=True))       # (M, 1)
    l_fn = jnp.sum(fnrm, axis=0, keepdims=True) * (1.0 / M)               # (1, 1)

    # motive_height on the flattened mean cohomology vector (see TODO above)
    wh = consts[:, CR + D:2 * CR + D]                          # (1, CR)
    bh = consts[:, 2 * CR + D:2 * CR + D + 1]                  # (1, 1)
    mean_cohom = jnp.mean(cohom, axis=0, keepdims=True)        # (1, CR)
    mheight = jnp.sum(mean_cohom * wh, axis=-1, keepdims=True) + bh       # (1, 1)

    # quantum_entropy over the (exactly normalized) attention weights
    w2 = w.reshape(MH * S, S)
    ent = -jnp.sum(w2 * jnp.log(w2 + 1e-10), axis=-1, keepdims=True)      # (MH*S, 1)
    qe = jnp.sum(ent, axis=0, keepdims=True) * (1.0 / (MH * S))           # (1, 1)

    met_w = metrics_ref.shape[-1]
    pad = jnp.zeros((1, met_w - (C + 4)), jnp.float32)
    row = jnp.concatenate([cohom_class, mheight, l_fn, adelic, qe, pad], axis=-1)

    # accumulate per-step means across the (usually size-1) batch grid axis
    b = pl.program_id(0)

    @pl.when(b == 0)
    def _():
        metrics_ref[...] = jnp.zeros_like(metrics_ref)

    metrics_ref[...] += row

    @pl.when(b == n_steps - 1)
    def _():
        metrics_ref[...] = metrics_ref[...] * (1.0 / n_steps)


def quantum_motivic_tile_forward(q, k, v, params, *, num_heads=1,
                                 cohomology_dim=8, motive_rank=4, size=8,
                                 return_metrics=True, batch_block=None):
    B, S, D = q.shape
    H = num_heads
    C = cohomology_dim
    R = motive_rank
    CR = C * R
    if batch_block is None:
        # Single grid step: the kernel is latency/fixed-overhead bound at toy sizes.
        # Set batch_block = B // 2 on v7x once per-step work exceeds ~1 us.
        batch_block = B
    assert B % batch_block == 0
    n_b = B // batch_block
    cdt = jnp.bfloat16

    # ---- parameter fusion (all algebra in f32, single bf16 cast) ----
    # 1) fused QKV: block-diagonal weight with the concatenated bias as its last row
    w_qkv = jax.scipy.linalg.block_diag(params['wq'], params['wk'], params['wv'])
    b_qkv = jnp.concatenate([params['bq'], params['bk'], params['bv']], axis=-1)
    w_qkv_full = jnp.concatenate([w_qkv, b_qkv], axis=0).astype(cdt)      # (3D+1, 3D)

    # 2) output proj folded into cohomology|field proj ("out" is never emitted)
    w_cf = jnp.concatenate([params['wc'], params['wf']], axis=-1)         # (D, CR+D)
    b_cf = jnp.concatenate([params['bc'], params['bf']], axis=-1)         # (1, CR+D)
    w_ocf = (params['wo'] @ w_cf).astype(cdt)                             # (D, CR+D)
    b_ocf = params['bo'] @ w_cf + b_cf                                    # (1, CR+D) f32

    # 3) remaining f32 constants packed into one lane row: [b_ocf | wh | bh | 0...]
    wh = params['wh'].reshape(1, CR)
    bh = params['bh'].reshape(1, 1)
    used = 2 * CR + D + 1
    consts_w = max(128, ((used + 127) // 128) * 128)
    consts = jnp.concatenate(
        [b_ocf, wh, bh, jnp.zeros((1, consts_w - used), jnp.float32)], axis=-1)

    # input with the ones column that carries the folded QKV bias
    qkv = jnp.concatenate(
        [q, k, v, jnp.ones((B, S, 1), jnp.float32)], axis=-1).astype(cdt)  # (B,S,3D+1)

    met_w = 128

    in_specs = [
        pl.BlockSpec((batch_block, S, 3 * D + 1), lambda b: (b, 0, 0)),   # qkv (+ones)
        pl.BlockSpec((3 * D + 1, 3 * D), lambda b: (0, 0)),               # w_qkv_full
        pl.BlockSpec((D, CR + D), lambda b: (0, 0)),                      # w_ocf
        pl.BlockSpec((1, consts_w), lambda b: (0, 0)),                    # consts row
    ]
    out_specs = [
        pl.BlockSpec((batch_block, H, S, S), lambda b: (b, 0, 0, 0)),     # attn
        pl.BlockSpec((1, met_w), lambda b: (0, 0)),                       # packed metrics
    ]

    flops = (2 * B * S * (3 * D + 1) * (3 * D)        # fused QKV projection
             + 2 * B * H * S * S * (D // H) * 2       # scores + context
             + 2 * B * S * D * (CR + D))              # fused out/cohomology/field proj
    transcendentals = 2 * B * H * S * S               # exp + log (entropy)
    bytes_accessed = int(
        qkv.size * 2 + w_qkv_full.size * 2 + w_ocf.size * 2 + consts.size * 4
        + B * H * S * S * 4 + met_w * 4)
    cost = pl.CostEstimate(flops=int(flops), transcendentals=int(transcendentals),
                           bytes_accessed=bytes_accessed)

    attn_w, metrics_row = pl.pallas_call(
        partial(qmt_kernel, num_heads=H, hidden_dim=D, cohomology_dim=C,
                motive_rank=R, n_steps=n_b),
        out_shape=(
            jax.ShapeDtypeStruct((B, H, S, S), jnp.float32),
            jax.ShapeDtypeStruct((1, met_w), jnp.float32),
        ),
        grid_spec=pltpu.PrefetchScalarGridSpec(
            num_scalar_prefetch=0,
            grid=(n_b,),
            in_specs=in_specs,
            out_specs=out_specs,
        ),
        # metrics accumulate across the batch grid axis -> "arbitrary"
        compiler_params=pltpu.CompilerParams(
            dimension_semantics=("arbitrary",)),
        cost_estimate=cost,
    )(qkv, w_qkv_full, w_ocf, consts)

    if not return_metrics:
        return attn_w

    # ---- single host sync for ALL metrics ----
    mrow = np.asarray(jax.device_get(metrics_row))[0]
    cohomology_class = mrow[:C]
    motive_height = float(mrow[C])
    l_function_value = float(mrow[C + 1])
    adelic_norm = float(mrow[C + 2])
    quantum_entropy = float(mrow[C + 3])

    n_params = (4 * (D * D + D)          # query/key/value/output linears
                + D * CR + CR            # cohomology_proj
                + D * D + D              # field_proj
                + CR + 1)                # height_proj
    current_memory = float(size * D * 4 + CR * 4 + n_params * 4) * \
        (1.0 + quantum_entropy / 5.0)
    memory_stats = {
        'current_memory': current_memory,
        'peak_memory': current_memory,
        'quantum_overhead': quantum_entropy * current_memory / 5.0,
    }
    metrics = {
        'cohomology_class': cohomology_class,
        'motive_height': motive_height,
        'l_function_value': l_function_value,
        'adelic_norm': adelic_norm,
        'quantum_entropy': quantum_entropy,
        'memory_stats': memory_stats,
    }
    return attn_w, metrics


def init_params(key, hidden_dim, cohomology_dim, motive_rank):
    D = hidden_dim
    CR = cohomology_dim * motive_rank
    keys = jax.random.split(key, 14)

    def lin(kw, kb, fan_in, fan_out):
        bound = 1.0 / math.sqrt(fan_in)
        w_t = jax.random.uniform(kw, (fan_in, fan_out), jnp.float32, -bound, bound)
        b = jax.random.uniform(kb, (1, fan_out), jnp.float32, -bound, bound)
        return w_t, b

    p = {}
    p['wq'], p['bq'] = lin(keys[0], keys[1], D, D)
    p['wk'], p['bk'] = lin(keys[2], keys[3], D, D)
    p['wv'], p['bv'] = lin(keys[4], keys[5], D, D)
    p['wo'], p['bo'] = lin(keys[6], keys[7], D, D)
    p['wc'], p['bc'] = lin(keys[8], keys[9], D, CR)
    p['wf'], p['bf'] = lin(keys[10], keys[11], D, D)
    wh, bh = lin(keys[12], keys[13], CR, 1)
    p['wh'] = wh[:, 0]       # (CR,)
    p['bh'] = bh[0]          # (1,)
    return p


def reference_attention(q, k, v, params, num_heads):
    """Pure-JAX f32 reference of the PyTorch _apply_attention output."""
    B, S, D = q.shape
    hd = D // num_heads
    Q = q @ params['wq'] + params['bq']
    K = k @ params['wk'] + params['bk']
    Qh = Q.reshape(B, S, num_heads, hd).transpose(0, 2, 1, 3)
    Kh = K.reshape(B, S, num_heads, hd).transpose(0, 2, 1, 3)
    s = jnp.einsum('bhqd,bhkd->bhqk', Qh, Kh) / math.sqrt(hd)
    return jax.nn.softmax(s, axis=-1)


if __name__ == "__main__":
    B, S, D = 2, 8, 32
    num_heads = 1
    cohomology_dim, motive_rank = 8, 4

    key = jax.random.PRNGKey(0)
    kq, kk, kv, kp = jax.random.split(key, 4)
    q = jax.random.normal(kq, (B, S, D), jnp.float32)
    k = jax.random.normal(kk, (B, S, D), jnp.float32)
    v = jax.random.normal(kv, (B, S, D), jnp.float32)
    params = init_params(kp, D, cohomology_dim, motive_rank)

    attn_pattern, metrics = quantum_motivic_tile_forward(
        q, k, v, params, num_heads=num_heads,
        cohomology_dim=cohomology_dim, motive_rank=motive_rank, size=S)
    jax.block_until_ready(attn_pattern)

    assert attn_pattern.shape == (B, num_heads, S, S)
    # exact f32 normalization -> rows of the attention pattern sum to 1 tightly
    rowsums = jnp.sum(attn_pattern, axis=-1)
    assert bool(jnp.allclose(rowsums, 1.0, atol=1e-3))
    # compare against a pure-JAX f32 reference (bf16 MXU operands => loose tol)
    ref = reference_attention(q, k, v, params, num_heads)
    assert bool(jnp.allclose(attn_pattern, ref, atol=2e-2))

    # metrics sanity: in-kernel entropy must match entropy of the returned weights
    ent_host = float(-(attn_pattern * jnp.log(attn_pattern + 1e-10)).sum(-1).mean())
    assert abs(metrics['quantum_entropy'] - ent_host) < 1e-3
    assert metrics['cohomology_class'].shape == (cohomology_dim,)
    for name in ('motive_height', 'l_function_value', 'adelic_norm',
                 'quantum_entropy'):
        assert np.isfinite(metrics[name])
    assert np.all(np.isfinite(metrics['cohomology_class']))

    print("KERNEL_OK")
</pallas_src>

<mosaic_0001>
module attributes {stable_mosaic.version = 11 : i64} {
  func.func @qmt_kernel(%arg0: i32, %arg1: memref<2x8x97xbf16, #tpu.memory_space<vmem>>, %arg2: memref<97x96xbf16, #tpu.memory_space<vmem>>, %arg3: memref<32x64xbf16, #tpu.memory_space<vmem>>, %arg4: memref<1x128xf32, #tpu.memory_space<vmem>>, %arg5: memref<2x1x8x8xf32, #tpu.memory_space<vmem>>, %arg6: memref<1x128xf32, #tpu.memory_space<vmem>>) attributes {dimension_semantics = [#tpu.dimension_semantics<arbitrary>], iteration_bounds = array<i64: 1>, scalar_prefetch = 0 : i64, scratch_operands = 0 : i64, tpu.core_type = #tpu.core_type<tc>, window_params = [{transform_indices = @transform_0, window_bounds = array<i64: 2, 8, 97>}, {pipeline_mode = #tpu.pipeline_mode<synchronous>, transform_indices = @transform_1, window_bounds = array<i64: 97, 96>}, {pipeline_mode = #tpu.pipeline_mode<synchronous>, transform_indices = @transform_2, window_bounds = array<i64: 32, 64>}, {pipeline_mode = #tpu.pipeline_mode<synchronous>, transform_indices = @transform_3, window_bounds = array<i64: 1, 128>}, {transform_indices = @transform_4, window_bounds = array<i64: 2, 1, 8, 8>}, {pipeline_mode = #tpu.pipeline_mode<synchronous>, transform_indices = @transform_5, window_bounds = array<i64: 1, 128>}]} {
    %c0 = arith.constant 0 : index
    %c0_0 = arith.constant 0 : index
    %c0_1 = arith.constant 0 : index
    %0 = vector.load %arg1[%c0, %c0_0, %c0_1] : memref<2x8x97xbf16, #tpu.memory_space<vmem>>, vector<2x8x97xbf16>
    %1 = vector.shape_cast %0 : vector<2x8x97xbf16> to vector<16x97xbf16>
    %c0_2 = arith.constant 0 : index
    %c0_3 = arith.constant 0 : index
    %2 = vector.load %arg2[%c0_2, %c0_3] : memref<97x96xbf16, #tpu.memory_space<vmem>>, vector<97x96xbf16>
    %cst = arith.constant dense<0.000000e+00> : vector<16x96xf32>
    %3 = tpu.matmul %1, %2, %cst {dimension_numbers = #tpu.dot_dimension_numbers<[1], [0], [0], [1], [0, 0, 1, 1], [], []>} : vector<16x97xbf16>, vector<97x96xbf16>, vector<16x96xf32> -> vector<16x96xf32>
    %4 = vector.extract_strided_slice %3 {offsets = [0, 0], sizes = [16, 32], strides = [1, 1]} : vector<16x96xf32> to vector<16x32xf32>
    %5 = vector.shape_cast %4 : vector<16x32xf32> to vector<2x8x32xf32>
    %6 = vector.extract_strided_slice %3 {offsets = [0, 32], sizes = [16, 32], strides = [1, 1]} : vector<16x96xf32> to vector<16x32xf32>
    %7 = vector.shape_cast %6 : vector<16x32xf32> to vector<2x8x32xf32>
    %8 = vector.extract_strided_slice %3 {offsets = [0, 64], sizes = [16, 32], strides = [1, 1]} : vector<16x96xf32> to vector<16x32xf32>
    %9 = vector.shape_cast %8 : vector<16x32xf32> to vector<2x8x32xf32>
    %10 = arith.truncf %5 : vector<2x8x32xf32> to vector<2x8x32xbf16>
    %11 = arith.truncf %7 : vector<2x8x32xf32> to vector<2x8x32xbf16>
    "tpu.trace_start"() <{level = 10 : i32, message = "bqd,bkd->bqk"}> : () -> ()
    %cst_4 = arith.constant dense<0.000000e+00> : vector<2x8x8xf32>
    %12 = tpu.matmul %10, %11, %cst_4 {dimension_numbers = #tpu.dot_dimension_numbers<[2], [2], [1], [1], [0, 0, 0, 1, 1, 1], [0], [0]>} : vector<2x8x32xbf16>, vector<2x8x32xbf16>, vector<2x8x8xf32> -> vector<2x8x8xf32>
    "tpu.trace_stop"() : () -> ()
    %cst_5 = arith.constant 0.176776692 : f32
    %13 = vector.broadcast %cst_5 : f32 to vector<2x8x8xf32>
    %14 = arith.mulf %12, %13 : vector<2x8x8xf32>
    %cst_6 = arith.constant dense<0xFF800000> : vector<2x8xf32>
    %15 = vector.multi_reduction <maximumf>, %14, %cst_6 [2] : vector<2x8x8xf32> to vector<2x8xf32>
    %16 = vector.shape_cast %15 : vector<2x8xf32> to vector<2x8x1xf32>
    %17 = vector.broadcast %16 : vector<2x8x1xf32> to vector<2x8x8xf32>
    %18 = arith.subf %14, %17 : vector<2x8x8xf32>
    %19 = math.exp %18 : vector<2x8x8xf32>
    %cst_7 = arith.constant dense<0.000000e+00> : vector<2x8xf32>
    %20 = vector.multi_reduction <add>, %19, %cst_7 [2] : vector<2x8x8xf32> to vector<2x8xf32>
    %21 = vector.shape_cast %20 : vector<2x8xf32> to vector<2x8x1xf32>
    %22 = vector.broadcast %21 : vector<2x8x1xf32> to vector<2x8x8xf32>
    %23 = arith.divf %19, %22 : vector<2x8x8xf32>
    %24 = vector.shape_cast %23 : vector<2x8x8xf32> to vector<2x1x8x8xf32>
    %c0_8 = arith.constant 0 : index
    %c0_9 = arith.constant 0 : index
    %c0_10 = arith.constant 0 : index
    %c0_11 = arith.constant 0 : index
    %25 = vector.load %arg5[%c0_8, %c0_9, %c0_10, %c0_11] : memref<2x1x8x8xf32, #tpu.memory_space<vmem>>, vector<2x1x8x8xf32>
    tpu.vector_store %arg5[%c0_8, %c0_9, %c0_10, %c0_11], %24 {strides = array<i32>} : memref<2x1x8x8xf32, #tpu.memory_space<vmem>>, vector<2x1x8x8xf32>,
    %26 = arith.truncf %23 : vector<2x8x8xf32> to vector<2x8x8xbf16>
    %27 = arith.truncf %9 : vector<2x8x32xf32> to vector<2x8x32xbf16>
    "tpu.trace_start"() <{level = 10 : i32, message = "bqk,bkd->bqd"}> : () -> ()
    %cst_12 = arith.constant dense<0.000000e+00> : vector<2x8x32xf32>
    %28 = tpu.matmul %26, %27, %cst_12 {dimension_numbers = #tpu.dot_dimension_numbers<[2], [1], [1], [2], [0, 0, 0, 1, 1, 2], [0], [0]>} : vector<2x8x8xbf16>, vector<2x8x32xbf16>, vector<2x8x32xf32> -> vector<2x8x32xf32>
    "tpu.trace_stop"() : () -> ()
    %29 = vector.shape_cast %28 : vector<2x8x32xf32> to vector<16x32xf32>
    %c0_13 = arith.constant 0 : index
    %c0_14 = arith.constant 0 : index
    %30 = vector.load %arg4[%c0_13, %c0_14] : memref<1x128xf32, #tpu.memory_space<vmem>>, vector<1x128xf32>
    %31 = vector.extract_strided_slice %30 {offsets = [0, 0], sizes = [1, 64], strides = [1, 1]} : vector<1x128xf32> to vector<1x64xf32>
    %32 = arith.truncf %29 : vector<16x32xf32> to vector<16x32xbf16>
    %c0_15 = arith.constant 0 : index
    %c0_16 = arith.constant 0 : index
    %33 = vector.load %arg3[%c0_15, %c0_16] : memref<32x64xbf16, #tpu.memory_space<vmem>>, vector<32x64xbf16>
    %cst_17 = arith.constant dense<0.000000e+00> : vector<16x64xf32>
    %34 = tpu.matmul %32, %33, %cst_17 {dimension_numbers = #tpu.dot_dimension_numbers<[1], [0], [0], [1], [0, 0, 1, 1], [], []>} : vector<16x32xbf16>, vector<32x64xbf16>, vector<16x64xf32> -> vector<16x64xf32>
    %35 = vector.broadcast %31 : vector<1x64xf32> to vector<16x64xf32>
    %36 = arith.addf %34, %35 : vector<16x64xf32>
    %37 = vector.extract_strided_slice %36 {offsets = [0, 0], sizes = [16, 32], strides = [1, 1]} : vector<16x64xf32> to vector<16x32xf32>
    %38 = vector.extract_strided_slice %36 {offsets = [0, 32], sizes = [16, 32], strides = [1, 1]} : vector<16x64xf32> to vector<16x32xf32>
    %cst_18 = arith.constant 0.000000e+00 : f32
    %39 = vector.broadcast %cst_18 : f32 to vector<1x8xf32>
    %cst_19 = arith.constant 0.000000e+00 : f32
    %40 = vector.broadcast %cst_19 : f32 to vector<1x1xf32>
    %41 = vector.extract_strided_slice %37 {offsets = [0, 0], sizes = [16, 8], strides = [1, 1]} : vector<16x32xf32> to vector<16x8xf32>
    %cst_20 = arith.constant dense<0.000000e+00> : vector<8xf32>
    %42 = vector.multi_reduction <add>, %41, %cst_20 [0] : vector<16x8xf32> to vector<8xf32>
    %43 = vector.shape_cast %42 : vector<8xf32> to vector<1x8xf32>
    %44 = arith.addf %39, %43 : vector<1x8xf32>
    %45 = arith.mulf %41, %41 : vector<16x8xf32>
    %cst_21 = arith.constant dense<0.000000e+00> : vector<16xf32>
    %46 = vector.multi_reduction <add>, %45, %cst_21 [1] : vector<16x8xf32> to vector<16xf32>
    %47 = vector.shape_cast %46 : vector<16xf32> to vector<16x1xf32>
    %48 = math.sqrt %47 : vector<16x1xf32>
    %cst_22 = arith.constant dense<0.000000e+00> : vector<1xf32>
    %49 = vector.multi_reduction <add>, %48, %cst_22 [0] : vector<16x1xf32> to vector<1xf32>
    %50 = vector.shape_cast %49 : vector<1xf32> to vector<1x1xf32>
    %51 = arith.addf %40, %50 : vector<1x1xf32>
    %52 = vector.extract_strided_slice %37 {offsets = [0, 8], sizes = [16, 8], strides = [1, 1]} : vector<16x32xf32> to vector<16x8xf32>
    %cst_23 = arith.constant dense<0.000000e+00> : vector<8xf32>
    %53 = vector.multi_reduction <add>, %52, %cst_23 [0] : vector<16x8xf32> to vector<8xf32>
    %54 = vector.shape_cast %53 : vector<8xf32> to vector<1x8xf32>
    %55 = arith.addf %44, %54 : vector<1x8xf32>
    %56 = arith.mulf %52, %52 : vector<16x8xf32>
    %cst_24 = arith.constant dense<0.000000e+00> : vector<16xf32>
    %57 = vector.multi_reduction <add>, %56, %cst_24 [1] : vector<16x8xf32> to vector<16xf32>
    %58 = vector.shape_cast %57 : vector<16xf32> to vector<16x1xf32>
    %59 = math.sqrt %58 : vector<16x1xf32>
    %cst_25 = arith.constant dense<0.000000e+00> : vector<1xf32>
    %60 = vector.multi_reduction <add>, %59, %cst_25 [0] : vector<16x1xf32> to vector<1xf32>
    %61 = vector.shape_cast %60 : vector<1xf32> to vector<1x1xf32>
    %62 = arith.addf %51, %61 : vector<1x1xf32>
    %63 = vector.extract_strided_slice %37 {offsets = [0, 16], sizes = [16, 8], strides = [1, 1]} : vector<16x32xf32> to vector<16x8xf32>
    %cst_26 = arith.constant dense<0.000000e+00> : vector<8xf32>
    %64 = vector.multi_reduction <add>, %63, %cst_26 [0] : vector<16x8xf32> to vector<8xf32>
    %65 = vector.shape_cast %64 : vector<8xf32> to vector<1x8xf32>
    %66 = arith.addf %55, %65 : vector<1x8xf32>
    %67 = arith.mulf %63, %63 : vector<16x8xf32>
    %cst_27 = arith.constant dense<0.000000e+00> : vector<16xf32>
    %68 = vector.multi_reduction <add>, %67, %cst_27 [1] : vector<16x8xf32> to vector<16xf32>
    %69 = vector.shape_cast %68 : vector<16xf32> to vector<16x1xf32>
    %70 = math.sqrt %69 : vector<16x1xf32>
    %cst_28 = arith.constant dense<0.000000e+00> : vector<1xf32>
    %71 = vector.multi_reduction <add>, %70, %cst_28 [0] : vector<16x1xf32> to vector<1xf32>
    %72 = vector.shape_cast %71 : vector<1xf32> to vector<1x1xf32>
    %73 = arith.addf %62, %72 : vector<1x1xf32>
    %74 = vector.extract_strided_slice %37 {offsets = [0, 24], sizes = [16, 8], strides = [1, 1]} : vector<16x32xf32> to vector<16x8xf32>
    %cst_29 = arith.constant dense<0.000000e+00> : vector<8xf32>
    %75 = vector.multi_reduction <add>, %74, %cst_29 [0] : vector<16x8xf32> to vector<8xf32>
    %76 = vector.shape_cast %75 : vector<8xf32> to vector<1x8xf32>
    %77 = arith.addf %66, %76 : vector<1x8xf32>
    %78 = arith.mulf %74, %74 : vector<16x8xf32>
    %cst_30 = arith.constant dense<0.000000e+00> : vector<16xf32>
    %79 = vector.multi_reduction <add>, %78, %cst_30 [1] : vector<16x8xf32> to vector<16xf32>
    %80 = vector.shape_cast %79 : vector<16xf32> to vector<16x1xf32>
    %81 = math.sqrt %80 : vector<16x1xf32>
    %cst_31 = arith.constant dense<0.000000e+00> : vector<1xf32>
    %82 = vector.multi_reduction <add>, %81, %cst_31 [0] : vector<16x1xf32> to vector<1xf32>
    %83 = vector.shape_cast %82 : vector<1xf32> to vector<1x1xf32>
    %84 = arith.addf %73, %83 : vector<1x1xf32>
    %cst_32 = arith.constant 1.562500e-02 : f32
    %85 = vector.broadcast %cst_32 : f32 to vector<1x8xf32>
    %86 = arith.mulf %77, %85 : vector<1x8xf32>
    %cst_33 = arith.constant 1.562500e-02 : f32
    %87 = vector.broadcast %cst_33 : f32 to vector<1x1xf32>
    %88 = arith.mulf %84, %87 : vector<1x1xf32>
    %89 = arith.mulf %38, %38 : vector<16x32xf32>
    %cst_34 = arith.constant dense<0.000000e+00> : vector<16xf32>
    %90 = vector.multi_reduction <add>, %89, %cst_34 [1] : vector<16x32xf32> to vector<16xf32>
    %91 = vector.shape_cast %90 : vector<16xf32> to vector<16x1xf32>
    %92 = math.sqrt %91 : vector<16x1xf32>
    %cst_35 = arith.constant dense<0.000000e+00> : vector<1xf32>
    %93 = vector.multi_reduction <add>, %92, %cst_35 [0] : vector<16x1xf32> to vector<1xf32>
    %94 = vector.shape_cast %93 : vector<1xf32> to vector<1x1xf32>
    %cst_36 = arith.constant 6.250000e-02 : f32
    %95 = vector.broadcast %cst_36 : f32 to vector<1x1xf32>
    %96 = arith.mulf %94, %95 : vector<1x1xf32>
    %97 = vector.extract_strided_slice %30 {offsets = [0, 64], sizes = [1, 32], strides = [1, 1]} : vector<1x128xf32> to vector<1x32xf32>
    %98 = vector.extract_strided_slice %30 {offsets = [0, 96], sizes = [1, 1], strides = [1, 1]} : vector<1x128xf32> to vector<1x1xf32>
    %cst_37 = arith.constant dense<0.000000e+00> : vector<32xf32>
    %99 = vector.multi_reduction <add>, %37, %cst_37 [0] : vector<16x32xf32> to vector<32xf32>
    %100 = vector.shape_cast %99 : vector<32xf32> to vector<1x32xf32>
    %cst_38 = arith.constant 1.600000e+01 : f32
    %101 = vector.broadcast %cst_38 : f32 to vector<1x32xf32>
    %102 = arith.divf %100, %101 : vector<1x32xf32>
    %103 = arith.mulf %102, %97 : vector<1x32xf32>
    %cst_39 = arith.constant dense<0.000000e+00> : vector<1xf32>
    %104 = vector.multi_reduction <add>, %103, %cst_39 [1] : vector<1x32xf32> to vector<1xf32>
    %105 = vector.shape_cast %104 : vector<1xf32> to vector<1x1xf32>
    %106 = arith.addf %105, %98 : vector<1x1xf32>
    %107 = vector.shape_cast %23 : vector<2x8x8xf32> to vector<16x8xf32>
    %cst_40 = arith.constant 1.000000e-10 : f32
    %108 = vector.broadcast %cst_40 : f32 to vector<16x8xf32>
    %109 = arith.addf %107, %108 : vector<16x8xf32>
    %110 = math.log %109 : vector<16x8xf32>
    %111 = arith.mulf %107, %110 : vector<16x8xf32>
    %cst_41 = arith.constant dense<0.000000e+00> : vector<16xf32>
    %112 = vector.multi_reduction <add>, %111, %cst_41 [1] : vector<16x8xf32> to vector<16xf32>
    %113 = vector.shape_cast %112 : vector<16xf32> to vector<16x1xf32>
    %cst_42 = arith.constant 0.000000e+00 : f32
    %114 = vector.broadcast %cst_42 : f32 to vector<16x1xf32>
    %115 = arith.subf %114, %113 : vector<16x1xf32>
    %cst_43 = arith.constant dense<0.000000e+00> : vector<1xf32>
    %116 = vector.multi_reduction <add>, %115, %cst_43 [0] : vector<16x1xf32> to vector<1xf32>
    %117 = vector.shape_cast %116 : vector<1xf32> to vector<1x1xf32>
    %cst_44 = arith.constant 6.250000e-02 : f32
    %118 = vector.broadcast %cst_44 : f32 to vector<1x1xf32>
    %119 = arith.mulf %117, %118 : vector<1x1xf32>
    %cst_45 = arith.constant 0.000000e+00 : f32
    %120 = vector.broadcast %cst_45 : f32 to vector<1x116xf32>
    %121 = tpu.concatenate %86, %106, %96, %88, %119, %120 in 1 : vector<1x8xf32>, vector<1x1xf32>, vector<1x1xf32>, vector<1x1xf32>, vector<1x1xf32>, vector<1x116xf32> -> vector<1x128xf32>
    %c0_i32 = arith.constant 0 : i32
    %122 = arith.cmpi eq, %arg0, %c0_i32 : i32
    %123 = arith.extui %122 : i1 to i32
    %c0_i32_46 = arith.constant 0 : i32
    %124 = arith.cmpi ne, %123, %c0_i32_46 : i32
    scf.if %124 {
      %cst_53 = arith.constant 0.000000e+00 : f32
      %131 = vector.broadcast %cst_53 : f32 to vector<1x128xf32>
      %c0_54 = arith.constant 0 : index
      %c0_55 = arith.constant 0 : index
      %132 = vector.load %arg6[%c0_54, %c0_55] : memref<1x128xf32, #tpu.memory_space<vmem>>, vector<1x128xf32>
      tpu.vector_store %arg6[%c0_54, %c0_55], %131 {strides = array<i32>} : memref<1x128xf32, #tpu.memory_space<vmem>>, vector<1x128xf32>,
    } else {
    }
    %c0_47 = arith.constant 0 : index
    %c0_48 = arith.constant 0 : index
    %125 = vector.load %arg6[%c0_47, %c0_48] : memref<1x128xf32, #tpu.memory_space<vmem>>, vector<1x128xf32>
    %126 = arith.addf %125, %121 : vector<1x128xf32>
    %c0_49 = arith.constant 0 : index
    %c0_50 = arith.constant 0 : index
    %127 = vector.load %arg6[%c0_49, %c0_50] : memref<1x128xf32, #tpu.memory_space<vmem>>, vector<1x128xf32>
    tpu.vector_store %arg6[%c0_49, %c0_50], %126 {strides = array<i32>} : memref<1x128xf32, #tpu.memory_space<vmem>>, vector<1x128xf32>,
    %c0_i32_51 = arith.constant 0 : i32
    %128 = arith.cmpi eq, %arg0, %c0_i32_51 : i32
    %129 = arith.extui %128 : i1 to i32
    %c0_i32_52 = arith.constant 0 : i32
    %130 = arith.cmpi ne, %129, %c0_i32_52 : i32
    scf.if %130 {
      %c0_53 = arith.constant 0 : index
      %c0_54 = arith.constant 0 : index
      %131 = vector.load %arg6[%c0_53, %c0_54] : memref<1x128xf32, #tpu.memory_space<vmem>>, vector<1x128xf32>
      %cst_55 = arith.constant 1.000000e+00 : f32
      %132 = vector.broadcast %cst_55 : f32 to vector<1x128xf32>
      %133 = arith.mulf %131, %132 : vector<1x128xf32>
      %c0_56 = arith.constant 0 : index
      %c0_57 = arith.constant 0 : index
      %134 = vector.load %arg6[%c0_56, %c0_57] : memref<1x128xf32, #tpu.memory_space<vmem>>, vector<1x128xf32>
      tpu.vector_store %arg6[%c0_56, %c0_57], %133 {strides = array<i32>} : memref<1x128xf32, #tpu.memory_space<vmem>>, vector<1x128xf32>,
    } else {
    }
    return
  }
  func.func @transform_0(%arg0: i32) -> (i32, i32, i32) {
    %c0_i32 = arith.constant 0 : i32
    %c0_i32_0 = arith.constant 0 : i32
    %c0_i32_1 = arith.constant 0 : i32
    return %arg0, %c0_i32, %c0_i32_0 : i32, i32, i32
  }
  func.func @transform_1(%arg0: i32) -> (i32, i32) {
    %c0_i32 = arith.constant 0 : i32
    %c0_i32_0 = arith.constant 0 : i32
    %c0_i32_1 = arith.constant 0 : i32
    return %c0_i32, %c0_i32_0 : i32, i32
  }
  func.func @transform_2(%arg0: i32) -> (i32, i32) {
    %c0_i32 = arith.constant 0 : i32
    %c0_i32_0 = arith.constant 0 : i32
    %c0_i32_1 = arith.constant 0 : i32
    return %c0_i32, %c0_i32_0 : i32, i32
  }
  func.func @transform_3(%arg0: i32) -> (i32, i32) {
    %c0_i32 = arith.constant 0 : i32
    %c0_i32_0 = arith.constant 0 : i32
    %c0_i32_1 = arith.constant 0 : i32
    return %c0_i32, %c0_i32_0 : i32, i32
  }
  func.func @transform_4(%arg0: i32) -> (i32, i32, i32, i32) {
    %c0_i32 = arith.constant 0 : i32
    %c0_i32_0 = arith.constant 0 : i32
    %c0_i32_1 = arith.constant 0 : i32
    %c0_i32_2 = arith.constant 0 : i32
    return %arg0, %c0_i32, %c0_i32_0, %c0_i32_1 : i32, i32, i32, i32
  }
  func.func @transform_5(%arg0: i32) -> (i32, i32) {
    %c0_i32 = arith.constant 0 : i32
    %c0_i32_0 = arith.constant 0 : i32
    %c0_i32_1 = arith.constant 0 : i32
    return %c0_i32, %c0_i32_0 : i32, i32
  }
}

</mosaic_0001>

<llo_original>
// kernel: tpu_custom_call.1
$region0: #{tpu_custom_call.1}
  #allocation0 [shape = 'u32[]', space=smem, size = 0x4, offset = 0x4, fixed_abs, tag = 'smem constant byte address 0x4 - core index']
  #allocation1 [shape = 'u32[72,128]{1,0:T(1,128)}', space=vmem, size = 0x9000, scoped, tag = 'internal scratch']
  %s0 = inlined_call_operand.vmem [shape: bf16[2,8,97], index: 0, kind: input, shape index: {}]
  %s1 = inlined_call_operand.vmem [shape: bf16[97,96], index: 1, kind: input, shape index: {}]
  %s2 = inlined_call_operand.vmem [shape: bf16[32,64], index: 2, kind: input, shape index: {}]
  %s3 = inlined_call_operand.vmem [shape: f32[1,128], index: 3, kind: input, shape index: {}]
  %s4 = inlined_call_operand.hbm [shape: f32[2,1,8,8], index: 4, kind: output, shape index: {0}]
  %s5 = inlined_call_operand.hbm [shape: f32[1,128], index: 5, kind: output, shape index: {1}]
  %6 = xla_tuple %s4, %s5
  %s7 = sld [smem:[#allocation0]]
  $region42: #{tpu_custom_call.1} parent=0
    _
  %s9 = ssub.s32 1, %s7
  %s10 = scalar_select 0, %s9, %s7
  $region1: #{tpu_custom_call.1} parent=0
    #allocation2 [shape = 'u8[8192]{0}', space=vmem, size = 0x2000, scoped, tag = 'output window, operand 0, single buffered']
    #allocation3 [shape = 's32[1]{0}', space=sflag, size = 0x4, scoped, tag = 'scoped memory for tpu_custom_call.1']
    #allocation4 [shape = 'u8[512]{0}', space=vmem, size = 0x400, scoped, tag = 'output window, operand 1, single buffered']
    #allocation5 [shape = 's32[1]{0}', space=sflag, size = 0x4, scoped, tag = 'scoped memory for tpu_custom_call.1']
    %11 = vsyncpa [#allocation3], 0
    %12 = vsyncpa [#allocation5], 0
    // Predicated region
    $region2: #{tpu_custom_call.1} parent=1 // pred_check
      _
    $region3: #{tpu_custom_call.1} parent=1 // pred_check_branch
      %14 = sbr.rel (0) target = $region5
    $region4: #{tpu_custom_call.1} parent=1 // pred_region
      _
    $region5: #{tpu_custom_call.1} parent=1 // pred_fallthru
      _
    // Predicated region
    $region6: #{tpu_custom_call.1} parent=1 // pred_check
      _
    $region7: #{tpu_custom_call.1} parent=1 // pred_check_branch
      %16 = sbr.rel (0) target = $region9
    $region8: #{tpu_custom_call.1} parent=1 // pred_region
      _
    $region9: #{tpu_custom_call.1} parent=1 // pred_fallthru
      _
    // Predicated region
    $region10: #{tpu_custom_call.1} parent=1 // pred_check
      _
    $region11: #{tpu_custom_call.1} parent=1 // pred_check_branch
      %18 = sbr.rel (0) target = $region13
    $region12: #{tpu_custom_call.1} parent=1 // pred_region
      _
    $region13: #{tpu_custom_call.1} parent=1 // pred_fallthru
      _
    // Predicated region
    $region14: #{tpu_custom_call.1} parent=1 // pred_check
      _
    $region15: #{tpu_custom_call.1} parent=1 // pred_check_branch
      %20 = sbr.rel (0) target = $region17
    $region16: #{tpu_custom_call.1} parent=1 // pred_region
      _
    $region17: #{tpu_custom_call.1} parent=1 // pred_fallthru
      _
    %v22 = vld [vmem:[%s0] sm:$0xf]
    %v23 = vld [vmem:[%s0 + $0x4] sm:$0xf]
    %v24 = vld [vmem:[%s1] sm:$0xf]
    %v25 = vld [vmem:[%s1 + $0x4] sm:$0xf]
    %v26 = vld [vmem:[%s1 + $0x8] sm:$0xf]
    %v27 = vld [vmem:[%s1 + $0xc] sm:$0xf]
    %v28 = vld [vmem:[%s1 + $0x10] sm:$0xf]
    %v29 = vld [vmem:[%s1 + $0x14] sm:$0xf]
    %v30 = vld [vmem:[%s1 + $0x18] sm:$0xf]
    %v31 = vld [vmem:[%s1 + $0x1c] sm:$0xf]
    %v32 = vld [vmem:[%s1 + $0x20] sm:$0xf]
    %v33 = vld [vmem:[%s1 + $0x24] sm:$0xf]
    %v34 = vld [vmem:[%s1 + $0x28] sm:$0xf]
    %v35 = vld [vmem:[%s1 + $0x2c] sm:$0xf]
    %v36 = vld [vmem:[%s1 + $0x30] sm:$0x1]
    %v39 = vunpack.c.l.b16 %v22
    %v40 = vunpack.c.l.b16 %v23
    %v41 = vpack.c.b16 %v40, %v39
    %v55 = vunpack.c.l.b16 %v24
    %v56 = vunpack.c.l.b16 %v25
    %v57 = vunpack.c.l.b16 %v26
    %v58 = vunpack.c.l.b16 %v27
    %v59 = vunpack.c.l.b16 %v28
    %v60 = vunpack.c.l.b16 %v29
    %v61 = vunpack.c.l.b16 %v30
    %v62 = vunpack.c.l.b16 %v31
    %v63 = vunpack.c.l.b16 %v32
    %v64 = vunpack.c.l.b16 %v33
    %v65 = vunpack.c.l.b16 %v34
    %v66 = vunpack.c.l.b16 %v35
    %v67 = vunpack.c.l.b16 %v36
    %v68 = vpack.c.b16 %v56, %v55
    %v69 = vpack.c.b16 %v58, %v57
    %v70 = vpack.c.b16 %v60, %v59
    %v71 = vpack.c.b16 %v62, %v61
    %v72 = vpack.c.b16 %v64, %v63
    %v73 = vpack.c.b16 %v66, %v65
    %v74 = vpack.c.b16 %v67, %v67
    %vm81 = vcmask 793600
    %v83 = vsel %vm81, %v41, 0
    %vm85 = vcmask 1040384
    %v86 = vsel 0, 4294967295, 65535
    %v87 = vsel %vm85, %v86, 0
    %v89 = vand.u32 %v74, %v87
    %91 = vmatpush.bf16.msra.mxu0 0
    %92 = vmatpush.bf16.msra.mxu0 %v89
    %93 = vmatpush.bf16.msra.mxu0 %v73
    %94 = vmatpush.bf16.msra.mxu0 %v72
    %95 = vmatpush.bf16.msra.mxu0 %v71
    %96 = vmatpush.bf16.msra.mxu0 %v70
    %97 = vmatpush.bf16.msra.mxu0 %v69
    %98 = vmatpush.bf16.msra.mxu0 %v68
    %99 = vmatmul.bf16.gmra.mxu0 %v83
    %v100 = vpop.f32.mrf.mxu0
    %v101 = vadd.f32 0.0, %v100
    %v102 = vpop.f32.mrf.mxu0
    %v103 = vadd.f32 0.0, %v102
    %104 = vdwg.mxu0
    %v105 = vpack.c.bf16 %v101, %v101
    %v106 = vpack.c.bf16 %v103, %v103
    %v108 = vunpack.c.l.b16 %v105
    %v109 = vpack.c.b16 %v108, %v108
    %110 = vrot.lane.b32.xlu0 %v109, 96
    %v111 = vpop.permute.xlu0 %110
    %vm112 = vcmask 261120
    %v114 = vsel %vm112, %v105, 0
    %v117 = vsel %vm112, %v111, 0
    %119 = vmatpush.bf16.xpose.msra.mxu0 0
    %120 = vmatpush.bf16.xpose.msra.mxu0 0
    %121 = vmatpush.bf16.xpose.msra.mxu0 0
    %122 = vmatpush.bf16.xpose.msra.mxu0 0
    %123 = vmatpush.bf16.xpose.msra.mxu0 0
    %124 = vmatpush.bf16.xpose.msra.mxu0 0
    %125 = vmatpush.bf16.xpose.msra.mxu0 0
    %126 = vmatpush.bf16.xpose.msra.mxu0 %v117
    %127 = vmatmul.bf16.gmra.mxu0 %v114
    %v128 = vpop.f32.mrf.mxu0
    %v129 = vadd.f32 0.0, %v128
    %v130 = vpop.f32.mrf.mxu0
    %131 = vdwg.mxu0
    %v133 = vunpack.c.l.b16 %v106
    %v134 = vpack.c.b16 %v133, %v133
    %135 = vrot.lane.b32.xlu0 %v134, 96
    %v136 = vpop.permute.xlu0 %135
    %v138 = vsel %vm112, %v106, 0
    %v141 = vsel %vm112, %v136, 0
    %143 = vmatpush.bf16.xpose.msra.mxu0 0
    %144 = vmatpush.bf16.xpose.msra.mxu0 0
    %145 = vmatpush.bf16.xpose.msra.mxu0 0
    %146 = vmatpush.bf16.xpose.msra.mxu0 0
    %147 = vmatpush.bf16.xpose.msra.mxu0 0
    %148 = vmatpush.bf16.xpose.msra.mxu0 0
    %149 = vmatpush.bf16.xpose.msra.mxu0 0
    %150 = vmatpush.bf16.xpose.msra.mxu0 %v141
    %151 = vmatmul.bf16.gmra.mxu0 %v138
    %v152 = vpop.f32.mrf.mxu0
    %v153 = vadd.f32 0.0, %v152
    %v154 = vpop.f32.mrf.mxu0
    %155 = vdwg.mxu0
    %v156 = vmul.f32 %v129, 0.17677669
    %v157 = vmul.f32 %v153, 0.17677669
    %vm158 = vcmask 64512
    %v159 = vsel %vm158, %v156, -inf
    %160 = vmax.xlane.f32.xlu0 %v159
    %v161 = vpop.xlane.xlu0 %160
    %v162 = vsel %vm158, %v157, -inf
    %163 = vmax.xlane.f32.xlu0 %v162
    %v164 = vpop.xlane.xlu0 %163
    %v165 = vsub.f32 %v156, %v161
    %v166 = vsub.f32 %v157, %v164
    %v167 = vmul.f32 %v165, 1.442695
    %v168 = vpow.pop %v167
    %v169 = vmul.f32 %v166, 1.442695
    %v170 = vpow.pop %v169
    %v171 = vsel %vm158, %v168, 0.0
    %172 = vadd.xlane.f32.xlu0 %v171
    %v173 = vpop.xlane.xlu0 %172
    %v174 = vsel %vm158, %v170, 0.0
    %175 = vadd.xlane.f32.xlu0 %v174
    %v176 = vpop.xlane.xlu0 %175
    %v177 = vrcp.pop %v173
    %v178 = vmul.f32 %v173, %v177
    %v179 = vsub.f32 1.0, %v178
    %v180 = vmul.f32 %v177, %v179
    %v181 = vadd.f32 %v177, %v180
    %vm182 = vweird.f32 %v173
    %vm183 = vweird.f32 %v177
    %vm184 = vmor %vm182, %vm183
    %v185 = vsel %vm184, %v177, %v181
    %v186 = vand.u32 2147483647, %v173
    %vm187 = vcmp.eq.f32.partialorder %v186, 8.507059e+37
    %v188 = vand.u32 %v173, 2147483648
    %v189 = vor.u32 1.1754944e-38, %v188
    %v190 = vsel %vm187, %v189, %v185
    %v191 = vmul.f32 %v168, %v190
    %v192 = vrcp.pop %v176
    %v193 = vmul.f32 %v176, %v192
    %v194 = vsub.f32 1.0, %v193
    %v195 = vmul.f32 %v192, %v194
    %v196 = vadd.f32 %v192, %v195
    %vm197 = vweird.f32 %v176
    %vm198 = vweird.f32 %v192
    %vm199 = vmor %vm197, %vm198
    %v200 = vsel %vm199, %v192, %v196
    %v201 = vand.u32 2147483647, %v176
    %vm202 = vcmp.eq.f32.partialorder %v201, 8.507059e+37
    %v203 = vand.u32 %v176, 2147483648
    %v204 = vor.u32 1.1754944e-38, %v203
    %v205 = vsel %vm202, %v204, %v200
    %v206 = vmul.f32 %v170, %v205
    %207 = vst.msk [vmem:[#allocation2] sm:$0xff] %vm158, %v191
    %208 = vst.msk [vmem:[#allocation2 + $0x8] sm:$0xff] %vm158, %v206
    %v209 = vpack.c.bf16 %v191, %v191
    %v210 = vpack.c.bf16 %v206, %v206
    %211 = vrot.lane.b32.xlu0 %v109, 64
    %v212 = vpop.permute.xlu0 %211
    %v214 = vsel %vm158, %v209, 0
    %vm216 = vcmask 1043456
    %v218 = vsel %vm216, %v212, 0
    %220 = vmatpush.bf16.msra.mxu0 0
    %221 = vmatpush.bf16.msra.mxu0 0
    %222 = vmatpush.bf16.msra.mxu0 0
    %223 = vmatpush.bf16.msra.mxu0 0
    %224 = vmatpush.bf16.msra.mxu0 0
    %225 = vmatpush.bf16.msra.mxu0 0
    %226 = vmatpush.bf16.msra.mxu0 0
    %227 = vmatpush.bf16.msra.mxu0 %v218
    %228 = vmatmul.bf16.gmra.mxu0 %v214
    %v229 = vpop.f32.mrf.mxu0
    %v230 = vadd.f32 0.0, %v229
    %v231 = vpop.f32.mrf.mxu0
    %232 = vdwg.mxu0
    %233 = vrot.lane.b32.xlu0 %v134, 64
    %v234 = vpop.permute.xlu0 %233
    %v236 = vsel %vm158, %v210, 0
    %v239 = vsel %vm216, %v234, 0
    %241 = vmatpush.bf16.msra.mxu0 0
    %242 = vmatpush.bf16.msra.mxu0 0
    %243 = vmatpush.bf16.msra.mxu0 0
    %244 = vmatpush.bf16.msra.mxu0 0
    %245 = vmatpush.bf16.msra.mxu0 0
    %246 = vmatpush.bf16.msra.mxu0 0
    %247 = vmatpush.bf16.msra.mxu0 0
    %248 = vmatpush.bf16.msra.mxu0 %v239
    %249 = vmatmul.bf16.gmra.mxu0 %v236
    %v250 = vpop.f32.mrf.mxu0
    %v251 = vadd.f32 0.0, %v250
    %v252 = vpop.f32.mrf.mxu0
    %253 = vdwg.mxu0
    %v254 = vld [vmem:[%s3] sm:$0x1]
    %v255 = vpack.c.bf16 %v251, %v230
    %v256 = vld [vmem:[%s2] sm:$0xf]
    %v257 = vld [vmem:[%s2 + $0x4] sm:$0xf]
    %v258 = vld [vmem:[%s2 + $0x8] sm:$0xf]
    %v259 = vld [vmem:[%s2 + $0xc] sm:$0xf]
    %v261 = vperm.slane %v254, 0
    %v267 = vunpack.c.l.b16 %v256
    %v268 = vunpack.c.l.b16 %v257
    %v269 = vunpack.c.l.b16 %v258
    %v270 = vunpack.c.l.b16 %v259
    %v271 = vpack.c.b16 %v268, %v267
    %v272 = vpack.c.b16 %v270, %v269
    %v276 = vsel %vm112, %v255, 0
    %278 = vmatpush.bf16.msra.mxu0 0
    %279 = vmatpush.bf16.msra.mxu0 0
    %280 = vmatpush.bf16.msra.mxu0 0
    %281 = vmatpush.bf16.msra.mxu0 0
    %282 = vmatpush.bf16.msra.mxu0 0
    %283 = vmatpush.bf16.msra.mxu0 0
    %284 = vmatpush.bf16.msra.mxu0 %v272
    %285 = vmatpush.bf16.msra.mxu0 %v271
    %286 = vmatmul.bf16.gmra.mxu0 %v276
    %v287 = vpop.f32.mrf.mxu0
    %v288 = vadd.f32 %v261, %v287
    %v289 = vpop.f32.mrf.mxu0
    %v290 = vadd.f32 %v261, %v289
    %291 = vdwg.mxu0
    %v292 = vsel %vm158, %v288, 0.0
    %v293 = vsel %vm158, %v290, 0.0
    %v294 = vadd.f32 %v292, %v293
    %v295 = vrot.slane %v294, 4
    %v296 = vadd.f32 %v294, %v295
    %v297 = vrot.slane %v296, 2
    %v298 = vadd.f32 %v296, %v297
    %v299 = vrot.slane %v298, 1
    %v300 = vadd.f32 %v298, %v299
    %v301 = vadd.f32 %v300, 0.0
    %v302 = vmul.f32 %v288, %v288
    %v303 = vmul.f32 %v290, %v290
    %v304 = vsel %vm158, %v302, 0.0
    %305 = vadd.xlane.f32.xlu0 %v304
    %v306 = vpop.xlane.xlu0 %305
    %v307 = vsel %vm158, %v303, 0.0
    %308 = vadd.xlane.f32.xlu0 %v307
    %v309 = vpop.xlane.xlu0 %308
    %v310 = vrsqrt.pop %v306
    %v311 = vmul.f32 %v310, %v306
    %v312 = vmul.f32 %v311, %v310
    %v313 = vmul.f32 0.5, %v312
    %v314 = vsub.f32 1.5, %v313
    %v315 = vmul.f32 %v310, %v314
    %v316 = vmul.f32 %v306, %v315
    %vm317 = vcmp.eq.f32.partialorder %v306, inf
    %v318 = vsel %vm317, %v306, %v316
    %vm319 = vcmp.eq.f32.partialorder %v306, 0.0
    %v320 = vand.u32 %v306, 2147483648
    %v321 = vsel %vm319, %v320, %v318
    %v322 = vrsqrt.pop %v309
    %v323 = vmul.f32 %v322, %v309
    %v324 = vmul.f32 %v323, %v322
    %v325 = vmul.f32 0.5, %v324
    %v326 = vsub.f32 1.5, %v325
    %v327 = vmul.f32 %v322, %v326
    %v328 = vmul.f32 %v309, %v327
    %vm329 = vcmp.eq.f32.partialorder %v309, inf
    %v330 = vsel %vm329, %v309, %v328
    %vm331 = vcmp.eq.f32.partialorder %v309, 0.0
    %v332 = vand.u32 %v309, 2147483648
    %v333 = vsel %vm331, %v332, %v330
    %v334 = vadd.f32 %v321, %v333
    %v335 = vrot.slane %v334, 4
    %v336 = vadd.f32 %v334, %v335
    %v337 = vrot.slane %v336, 2
    %v338 = vadd.f32 %v336, %v337
    %v339 = vrot.slane %v338, 1
    %v340 = vadd.f32 %v338, %v339
    %v341 = vadd.f32 %v340, 0.0
    %vm342 = vcmask 130112
    %v343 = vsel %vm342, %v288, 0.0
    %v344 = vsel %vm342, %v290, 0.0
    %v345 = vadd.f32 %v343, %v344
    %v346 = vrot.slane %v345, 4
    %v347 = vadd.f32 %v345, %v346
    %v348 = vrot.slane %v347, 2
    %v349 = vadd.f32 %v347, %v348
    %v350 = vrot.slane %v349, 1
    %v351 = vadd.f32 %v349, %v350
    %353 = vrot.lane.b32.xlu0 %v351, 120
    %v354 = vpop.permute.xlu0 %353
    %v356 = vadd.f32 %v301, %v354
    %359 = vrot.lane.b32.xlu0 %v302, 120
    %v360 = vpop.permute.xlu0 %359
    %361 = vrot.lane.b32.xlu0 %v303, 120
    %v362 = vpop.permute.xlu0 %361
    %v365 = vsel %vm158, %v360, 0.0
    %366 = vadd.xlane.f32.xlu0 %v365
    %v367 = vpop.xlane.xlu0 %366
    %v368 = vsel %vm158, %v362, 0.0
    %369 = vadd.xlane.f32.xlu0 %v368
    %v370 = vpop.xlane.xlu0 %369
    %v371 = vrsqrt.pop %v367
    %v372 = vmul.f32 %v371, %v367
    %v373 = vmul.f32 %v372, %v371
    %v374 = vmul.f32 0.5, %v373
    %v375 = vsub.f32 1.5, %v374
    %v376 = vmul.f32 %v371, %v375
    %v377 = vmul.f32 %v367, %v376
    %vm378 = vcmp.eq.f32.partialorder %v367, inf
    %v379 = vsel %vm378, %v367, %v377
    %vm380 = vcmp.eq.f32.partialorder %v367, 0.0
    %v381 = vand.u32 %v367, 2147483648
    %v382 = vsel %vm380, %v381, %v379
    %v383 = vrsqrt.pop %v370
    %v384 = vmul.f32 %v383, %v370
    %v385 = vmul.f32 %v384, %v383
    %v386 = vmul.f32 0.5, %v385
    %v387 = vsub.f32 1.5, %v386
    %v388 = vmul.f32 %v383, %v387
    %v389 = vmul.f32 %v370, %v388
    %vm390 = vcmp.eq.f32.partialorder %v370, inf
    %v391 = vsel %vm390, %v370, %v389
    %vm392 = vcmp.eq.f32.partialorder %v370, 0.0
    %v393 = vand.u32 %v370, 2147483648
    %v394 = vsel %vm392, %v393, %v391
    %v395 = vadd.f32 %v382, %v394
    %v396 = vrot.slane %v395, 4
    %v397 = vadd.f32 %v395, %v396
    %v398 = vrot.slane %v397, 2
    %v399 = vadd.f32 %v397, %v398
    %v400 = vrot.slane %v399, 1
    %v401 = vadd.f32 %v399, %v400
    %v402 = vadd.f32 %v341, %v401
    %vm403 = vcmask 195712
    %v404 = vsel %vm403, %v288, 0.0
    %v405 = vsel %vm403, %v290, 0.0
    %v406 = vadd.f32 %v404, %v405
    %v407 = vrot.slane %v406, 4
    %v408 = vadd.f32 %v406, %v407
    %v409 = vrot.slane %v408, 2
    %v410 = vadd.f32 %v408, %v409
    %v411 = vrot.slane %v410, 1
    %v412 = vadd.f32 %v410, %v411
    %414 = vrot.lane.b32.xlu0 %v412, 112
    %v415 = vpop.permute.xlu0 %414
    %v417 = vadd.f32 %v356, %v415
    %418 = vrot.lane.b32.xlu0 %v302, 112
    %v419 = vpop.permute.xlu0 %418
    %420 = vrot.lane.b32.xlu0 %v303, 112
    %v421 = vpop.permute.xlu0 %420
    %v424 = vsel %vm158, %v419, 0.0
    %425 = vadd.xlane.f32.xlu0 %v424
    %v426 = vpop.xlane.xlu0 %425
    %v427 = vsel %vm158, %v421, 0.0
    %428 = vadd.xlane.f32.xlu0 %v427
    %v429 = vpop.xlane.xlu0 %428
    %v430 = vrsqrt.pop %v426
    %v431 = vmul.f32 %v430, %v426
    %v432 = vmul.f32 %v431, %v430
    %v433 = vmul.f32 0.5, %v432
    %v434 = vsub.f32 1.5, %v433
    %v435 = vmul.f32 %v430, %v434
    %v436 = vmul.f32 %v426, %v435
    %vm437 = vcmp.eq.f32.partialorder %v426, inf
    %v438 = vsel %vm437, %v426, %v436
    %vm439 = vcmp.eq.f32.partialorder %v426, 0.0
    %v440 = vand.u32 %v426, 2147483648
    %v441 = vsel %vm439, %v440, %v438
    %v442 = vrsqrt.pop %v429
    %v443 = vmul.f32 %v442, %v429
    %v444 = vmul.f32 %v443, %v442
    %v445 = vmul.f32 0.5, %v444
    %v446 = vsub.f32 1.5, %v445
    %v447 = vmul.f32 %v442, %v446
    %v448 = vmul.f32 %v429, %v447
    %vm449 = vcmp.eq.f32.partialorder %v429, inf
    %v450 = vsel %vm449, %v429, %v448
    %vm451 = vcmp.eq.f32.partialorder %v429, 0.0
    %v452 = vand.u32 %v429, 2147483648
    %v453 = vsel %vm451, %v452, %v450
    %v454 = vadd.f32 %v441, %v453
    %v455 = vrot.slane %v454, 4
    %v456 = vadd.f32 %v454, %v455
    %v457 = vrot.slane %v456, 2
    %v458 = vadd.f32 %v456, %v457
    %v459 = vrot.slane %v458, 1
    %v460 = vadd.f32 %v458, %v459
    %v461 = vadd.f32 %v402, %v460
    %vm462 = vcmask 261312
    %v463 = vsel %vm462, %v288, 0.0
    %v464 = vsel %vm462, %v290, 0.0
    %v465 = vadd.f32 %v463, %v464
    %v466 = vrot.slane %v465, 4
    %v467 = vadd.f32 %v465, %v466
    %v468 = vrot.slane %v467, 2
    %v469 = vadd.f32 %v467, %v468
    %v470 = vrot.slane %v469, 1
    %v471 = vadd.f32 %v469, %v470
    %473 = vrot.lane.b32.xlu0 %v471, 104
    %v474 = vpop.permute.xlu0 %473
    %v476 = vadd.f32 %v417, %v474
    %477 = vrot.lane.b32.xlu0 %v302, 104
    %v478 = vpop.permute.xlu0 %477
    %479 = vrot.lane.b32.xlu0 %v303, 104
    %v480 = vpop.permute.xlu0 %479
    %v483 = vsel %vm158, %v478, 0.0
    %484 = vadd.xlane.f32.xlu0 %v483
    %v485 = vpop.xlane.xlu0 %484
    %v486 = vsel %vm158, %v480, 0.0
    %487 = vadd.xlane.f32.xlu0 %v486
    %v488 = vpop.xlane.xlu0 %487
    %v489 = vrsqrt.pop %v485
    %v490 = vmul.f32 %v489, %v485
    %v491 = vmul.f32 %v490, %v489
    %v492 = vmul.f32 0.5, %v491
    %v493 = vsub.f32 1.5, %v492
    %v494 = vmul.f32 %v489, %v493
    %v495 = vmul.f32 %v485, %v494
    %vm496 = vcmp.eq.f32.partialorder %v485, inf
    %v497 = vsel %vm496, %v485, %v495
    %vm498 = vcmp.eq.f32.partialorder %v485, 0.0
    %v499 = vand.u32 %v485, 2147483648
    %v500 = vsel %vm498, %v499, %v497
    %v501 = vrsqrt.pop %v488
    %v502 = vmul.f32 %v501, %v488
    %v503 = vmul.f32 %v502, %v501
    %v504 = vmul.f32 0.5, %v503
    %v505 = vsub.f32 1.5, %v504
    %v506 = vmul.f32 %v501, %v505
    %v507 = vmul.f32 %v488, %v506
    %vm508 = vcmp.eq.f32.partialorder %v488, inf
    %v509 = vsel %vm508, %v488, %v507
    %vm510 = vcmp.eq.f32.partialorder %v488, 0.0
    %v511 = vand.u32 %v488, 2147483648
    %v512 = vsel %vm510, %v511, %v509
    %v513 = vadd.f32 %v500, %v512
    %v514 = vrot.slane %v513, 4
    %v515 = vadd.f32 %v513, %v514
    %v516 = vrot.slane %v515, 2
    %v517 = vadd.f32 %v515, %v516
    %v518 = vrot.slane %v517, 1
    %v519 = vadd.f32 %v517, %v518
    %v520 = vadd.f32 %v461, %v519
    %v521 = vmul.f32 %v476, 0.015625
    %v522 = vmul.f32 %v520, 0.015625
    %523 = vrot.lane.b32.xlu0 %v302, 96
    %v524 = vpop.permute.xlu0 %523
    %525 = vrot.lane.b32.xlu0 %v303, 96
    %v526 = vpop.permute.xlu0 %525
    %v529 = vsel %vm112, %v524, 0.0
    %530 = vadd.xlane.f32.xlu0 %v529
    %v531 = vpop.xlane.xlu0 %530
    %v532 = vsel %vm112, %v526, 0.0
    %533 = vadd.xlane.f32.xlu0 %v532
    %v534 = vpop.xlane.xlu0 %533
    %v535 = vrsqrt.pop %v531
    %v536 = vmul.f32 %v535, %v531
    %v537 = vmul.f32 %v536, %v535
    %v538 = vmul.f32 0.5, %v537
    %v539 = vsub.f32 1.5, %v538
    %v540 = vmul.f32 %v535, %v539
    %v541 = vmul.f32 %v531, %v540
    %vm542 = vcmp.eq.f32.partialorder %v531, inf
    %v543 = vsel %vm542, %v531, %v541
    %vm544 = vcmp.eq.f32.partialorder %v531, 0.0
    %v545 = vand.u32 %v531, 2147483648
    %v546 = vsel %vm544, %v545, %v543
    %v547 = vrsqrt.pop %v534
    %v548 = vmul.f32 %v547, %v534
    %v549 = vmul.f32 %v548, %v547
    %v550 = vmul.f32 0.5, %v549
    %v551 = vsub.f32 1.5, %v550
    %v552 = vmul.f32 %v547, %v551
    %v553 = vmul.f32 %v534, %v552
    %vm554 = vcmp.eq.f32.partialorder %v534, inf
    %v555 = vsel %vm554, %v534, %v553
    %vm556 = vcmp.eq.f32.partialorder %v534, 0.0
    %v557 = vand.u32 %v534, 2147483648
    %v558 = vsel %vm556, %v557, %v555
    %v559 = vadd.f32 %v546, %v558
    %v560 = vrot.slane %v559, 4
    %v561 = vadd.f32 %v559, %v560
    %v562 = vrot.slane %v561, 2
    %v563 = vadd.f32 %v561, %v562
    %v564 = vrot.slane %v563, 1
    %v565 = vadd.f32 %v563, %v564
    %v566 = vmul.f32 %v565, 0.0625
    %v567 = vsel %vm112, %v288, 0.0
    %v568 = vsel %vm112, %v290, 0.0
    %v569 = vadd.f32 %v567, %v568
    %v570 = vrot.slane %v569, 4
    %v571 = vadd.f32 %v569, %v570
    %v572 = vrot.slane %v571, 2
    %v573 = vadd.f32 %v571, %v572
    %v574 = vrot.slane %v573, 1
    %v575 = vadd.f32 %v573, %v574
    %v576 = vrcp.pop 16.0
    %v577 = vmul.f32 16.0, %v576
    %v578 = vsub.f32 1.0, %v577
    %v579 = vmul.f32 %v576, %v578
    %v580 = vadd.f32 %v576, %v579
    %vm581 = vweird.f32 %v576
    %v582 = vsel %vm581, %v576, %v580
    %v583 = vmul.f32 %v575, %v582
    %584 = vrot.lane.b32.xlu0 %v261, 64
    %v585 = vpop.permute.xlu0 %584
    %v587 = vmul.f32 %v583, %v585
    %vm588 = vcmask 253952
    %v589 = vsel %vm588, %v587, 0.0
    %590 = vadd.xlane.f32.xlu0 %v589
    %v591 = vpop.xlane.xlu0 %590
    %592 = vrot.lane.b32.xlu0 %v261, 32
    %v593 = vpop.permute.xlu0 %592
    %v595 = vadd.f32 %v591, %v593
    %v596 = vadd.f32 %v191, 1e-10
    %v597 = vadd.f32 %v206, 1e-10
    %v598 = vlog2.pop %v596
    %v599 = vmul.f32 %v598, 0.6931472
    %v600 = vlog2.pop %v597
    %v601 = vmul.f32 %v600, 0.6931472
    %v602 = vmul.f32 %v191, %v599
    %v603 = vmul.f32 %v206, %v601
    %v604 = vsel %vm158, %v602, 0.0
    %605 = vadd.xlane.f32.xlu0 %v604
    %v606 = vpop.xlane.xlu0 %605
    %v607 = vsel %vm158, %v603, 0.0
    %608 = vadd.xlane.f32.xlu0 %v607
    %v609 = vpop.xlane.xlu0 %608
    %v610 = vsub.f32 0.0, %v606
    %v611 = vsub.f32 0.0, %v609
    %v612 = vadd.f32 %v610, %v611
    %v613 = vrot.slane %v612, 4
    %v614 = vadd.f32 %v612, %v613
    %v615 = vrot.slane %v614, 2
    %v616 = vadd.f32 %v614, %v615
    %v617 = vrot.slane %v616, 1
    %v618 = vadd.f32 %v616, %v617
    %v619 = vmul.f32 %v618, 0.0625
    %621 = vrot.lane.b32.xlu0 %v595, 8
    %v622 = vpop.permute.xlu0 %621
    %v624 = vsel %vm158, %v521, %v622
    %vm625 = vcmask 72704
    %v626 = vsel %vm625, %v624, %v566
    %vm627 = vcmask 80896
    %v628 = vsel %vm627, %v626, %v522
    %vm629 = vcmask 89088
    %v630 = vsel %vm629, %v628, %v619
    %vm631 = vcmask 97280
    %v632 = vsel %vm631, %v630, 0.0
    %p633 = scmp.eq.s32.totalorder 0, 0
    // Predicated region
    $region18: #{tpu_custom_call.1} parent=1 // pred_check
      %p634 = pneg %p633
    $region19: #{tpu_custom_call.1} parent=1 // pred_check_branch
      %636 = sbr.rel (%p634) target = $region21
    $region20: #{tpu_custom_call.1} parent=1 // pred_region
      %637 = vst [vmem:[#allocation4] sm:$0x1] 0.0
    $region21: #{tpu_custom_call.1} parent=1 // pred_fallthru
      _
    %v638 = vld [vmem:[#allocation4] sm:$0x1]
    %v639 = vadd.f32 %v638, %v632
    %640 = vst [vmem:[#allocation4] sm:$0x1] %v639
    // Predicated region
    $region22: #{tpu_custom_call.1} parent=1 // pred_check
      %p641 = pneg %p633
    $region23: #{tpu_custom_call.1} parent=1 // pred_check_branch
      %643 = sbr.rel (%p641) target = $region25
    $region24: #{tpu_custom_call.1} parent=1 // pred_region
      %v644 = vld [vmem:[#allocation4] sm:$0x1]
      %645 = vst [vmem:[#allocation4] sm:$0x1] %v644
    $region25: #{tpu_custom_call.1} parent=1 // pred_fallthru
      _
    // Predicated region
    $region26: #{tpu_custom_call.1} parent=1 // pred_check
      _
    $region27: #{tpu_custom_call.1} parent=1 // pred_check_branch
      %647 = sbr.rel (0) target = $region29
    $region28: #{tpu_custom_call.1} parent=1 // pred_region
      %649 = vsyncadd [#allocation3], 0
      %s650 = sshll.u32 [#allocation2], 4
      %s651 = int_to_ptr.vmem [resolvable:$true] %s650
      %s652 = sshll.u32 %s4, 4
      %s653 = int_to_ptr.hbm [resolvable:$true] %s652
      %658 = dma.vmem_to_hbm [thread:$0]  %s651, 256, %s653, [#allocation3], 128, 128, 8
    $region29: #{tpu_custom_call.1} parent=1 // pred_fallthru
      _
    // Predicated region
    $region30: #{tpu_custom_call.1} parent=1 // pred_check
      _
    $region31: #{tpu_custom_call.1} parent=1 // pred_check_branch
      %660 = sbr.rel (0) target = $region33
    $region32: #{tpu_custom_call.1} parent=1 // pred_region
      %662 = vsyncadd [#allocation5], 0
      %s664 = sshll.u32 [#allocation4], 4
      %s665 = int_to_ptr.vmem [resolvable:$true] %s664
      %s666 = sshll.u32 %s5, 4
      %s667 = int_to_ptr.hbm [resolvable:$true] %s666
      %669 = dma.vmem_to_hbm [thread:$0]  %s665, 16, %s667, [#allocation5]
    $region33: #{tpu_custom_call.1} parent=1 // pred_fallthru
      _
    // Predicated region
    $region34: #{tpu_custom_call.1} parent=1 // pred_check
      _
    $region35: #{tpu_custom_call.1} parent=1 // pred_check_branch
      %671 = sbr.rel (0) target = $region37
    $region36: #{tpu_custom_call.1} parent=1 // pred_region
      %673 = dma.done [#allocation3], 256
    $region37: #{tpu_custom_call.1} parent=1 // pred_fallthru
      _
    // Predicated region
    $region38: #{tpu_custom_call.1} parent=1 // pred_check
      _
    $region39: #{tpu_custom_call.1} parent=1 // pred_check_branch
      %675 = sbr.rel (0) target = $region41
    $region40: #{tpu_custom_call.1} parent=1 // pred_region
      %677 = dma.done [#allocation5], 16
    $region41: #{tpu_custom_call.1} parent=1 // pred_fallthru
      _
    %678 = vsyncpa [#allocation3], 1
    %679 = vsyncpa [#allocation5], 1

</llo_original>
